<compile_context>
chip_gen: v5e
topology: v5e:2x2
jax: 0.10.0
libtpu: 0.0.40
codegen_flags: <defaults>
</compile_context>

<pallas_src>
import jax
import jax.numpy as jnp
from jax.experimental import pallas as pl
from jax.experimental.pallas import tpu as pltpu


# ----------------------------- activations ---------------------------------

def _leaky_relu(x):
    # torch.nn.LeakyReLU default negative_slope = 0.01
    return jnp.where(x >= 0, x, 0.01 * x)


def _softplus(x):
    # Numerically stable single-exp form; matches torch.nn.Softplus(beta=1,
    # threshold=20) to f32 precision (difference <= exp(-20) ~ 2e-9).
    return jnp.maximum(x, 0.0) + jnp.log1p(jnp.exp(-jnp.abs(x)))


# ------------------------------- kernel -------------------------------------

def _make_parallel_ff_kernel(num_layers):
    """One grid program = one stream (mean or precision), all M models fused."""

    def kernel(x_ref, *refs):
        # ref order: w[0..L), b[0..L), raw_out, prec_out
        w_refs = refs[:num_layers]
        b_refs = refs[num_layers:2 * num_layers]
        raw_ref, prec_ref = refs[2 * num_layers:]

        # layer 0: (B, d_in) @ (d_in, M*d1)  -- all M models in one dot
        h = jnp.dot(x_ref[...], w_refs[0][0],
                    preferred_element_type=jnp.float32) + b_refs[0][0]

        # hidden / output layers: block-diagonal (M*d_i, M*d_{i+1}) weights,
        # so the whole (B, M*d_i) activation slab stays lane-dense in VMEM.
        for i in range(1, num_layers):
            h = _leaky_relu(h)
            h = jnp.dot(h, w_refs[i][0],
                        preferred_element_type=jnp.float32) + b_refs[i][0]

        raw_ref[0] = h
        # Group 0 (mean stream): this value is ignored by the wrapper.
        # Group 1 (precision stream): var_param=False branch of forward().
        prec_ref[0] = _softplus(h) * (1.0 - 1e-08) + 1e-08

    return kernel


# --------------------------- wrapper / packing -------------------------------

def _pack_layer0(w_mean, w_prec):
    # (M, d_in, d1) -> (d_in, M*d1) per stream; stack streams -> (2, d_in, M*d1)
    def flat(w):
        m, d_in, d1 = w.shape
        return jnp.transpose(w, (1, 0, 2)).reshape(d_in, m * d1)
    return jnp.stack([flat(w_mean), flat(w_prec)], axis=0)


def _pack_blockdiag(w_mean, w_prec):
    # (M, di, do) -> block-diagonal (M*di, M*do) per stream; stack -> (2, ...)
    def bd(w):
        m, di, do = w.shape
        eye = jnp.eye(m, dtype=w.dtype)
        big = jnp.einsum("mio,mn->mino", w, eye)   # (M, di, M, do)
        return big.reshape(m * di, m * do)
    return jnp.stack([bd(w_mean), bd(w_prec)], axis=0)


def _pack_bias(b_mean, b_prec):
    # (M, do) -> (1, M*do) per stream; stack -> (2, 1, M*do)
    return jnp.stack([b_mean.reshape(1, -1), b_prec.reshape(1, -1)], axis=0)


def parallel_ff_forward(x, mean_weights, mean_biases, prec_weights, prec_biases):
    """Pallas implementation of ParallelFF.forward (var_param=False, diag=False).

    Args:
      x: (B, D_in) float32
      mean_weights / prec_weights: list of (M, d_in, d_out)
      mean_biases / prec_biases:   list of (M, d_out)
    Returns:
      dict with 'mean', 'precision_pre_act', 'precision', each (B, M, D_out).
    """
    num_layers = len(mean_weights)
    B, d_in = x.shape
    M = mean_weights[0].shape[0]
    d_out = mean_weights[-1].shape[-1]

    # One-time packing (XLA ops in the wrapper, negligible at these sizes).
    packed_ws = [_pack_layer0(mean_weights[0], prec_weights[0])]
    packed_ws += [_pack_blockdiag(mean_weights[i], prec_weights[i])
                  for i in range(1, num_layers)]
    packed_bs = [_pack_bias(mean_biases[i], prec_biases[i])
                 for i in range(num_layers)]

    x_spec = pl.BlockSpec((B, d_in), lambda g: (0, 0))
    w_specs = [pl.BlockSpec((1,) + w.shape[1:], lambda g: (g, 0, 0))
               for w in packed_ws]
    b_specs = [pl.BlockSpec((1,) + b.shape[1:], lambda g: (g, 0, 0))
               for b in packed_bs]
    out_spec = pl.BlockSpec((1, B, M * d_out), lambda g: (g, 0, 0))
    out_shape = jax.ShapeDtypeStruct((2, B, M * d_out), jnp.float32)

    kernel = _make_parallel_ff_kernel(num_layers)

    raw, prec_full = pl.pallas_call(
        kernel,
        out_shape=(out_shape, out_shape),
        grid_spec=pltpu.PrefetchScalarGridSpec(
            num_scalar_prefetch=0,
            grid=(2,),                      # group 0 = mean, group 1 = precision
            in_specs=[x_spec] + w_specs + b_specs,
            out_specs=[out_spec, out_spec],
        ),
        compiler_params=pltpu.CompilerParams(
            dimension_semantics=("parallel",)),
    )(x, *packed_ws, *packed_bs)

    # Column ordering of the slab is model-blocked, so these are pure reshapes
    # (no transposes / extra HBM passes).
    mean = raw[0].reshape(B, M, d_out)
    precision_pre_act = raw[1].reshape(B, M, d_out)
    precision = prec_full[1].reshape(B, M, d_out)

    return {"mean": mean,
            "precision_pre_act": precision_pre_act,
            "precision": precision}


# ------------------------- pure-JAX reference --------------------------------

def parallel_ff_reference(x, mean_weights, mean_biases, prec_weights, prec_biases):
    mean = jnp.einsum("bi,mio->bmo", x, mean_weights[0]) + mean_biases[0]
    prec = jnp.einsum("bi,mio->bmo", x, prec_weights[0]) + prec_biases[0]
    for i in range(1, len(mean_weights)):
        mean = _leaky_relu(mean)
        prec = _leaky_relu(prec)
        mean = jnp.einsum("bmi,mio->bmo", mean, mean_weights[i]) + mean_biases[i]
        prec = jnp.einsum("bmi,mio->bmo", prec, prec_weights[i]) + prec_biases[i]
    precision = _softplus(prec) * (1.0 - 1e-08) + 1e-08
    return {"mean": mean, "precision_pre_act": prec, "precision": precision}


# --------------------------------- main ---------------------------------------

if __name__ == "__main__":
    # Module hyperparams (small, consistent with __init__ defaults)
    input_size = 4
    output_size = 2
    hidden_sizes = [32, 32]
    gammas = [1.0, 0.5]
    rhos = [1.0, 0.1]
    num_models = len(gammas) * len(rhos)          # diag=False -> cartesian product
    init_scale = 0.001
    batch = 8

    sizes = [input_size] + hidden_sizes + [output_size]
    layer_sizes = list(zip(sizes[:-1], sizes[1:]))

    key = jax.random.PRNGKey(0)
    keys = jax.random.split(key, 4 * len(layer_sizes) + 1)

    mean_weights, mean_biases, prec_weights, prec_biases = [], [], [], []
    k_idx = 0
    for (d_in, d_out) in layer_sizes:
        mean_weights.append(
            jax.random.normal(keys[k_idx], (num_models, d_in, d_out),
                              dtype=jnp.float32) * init_scale); k_idx += 1
        prec_weights.append(
            jax.random.normal(keys[k_idx], (num_models, d_in, d_out),
                              dtype=jnp.float32) * init_scale); k_idx += 1
        mean_biases.append(
            jax.random.normal(keys[k_idx], (num_models, d_out),
                              dtype=jnp.float32) * init_scale); k_idx += 1
        prec_biases.append(
            jax.random.normal(keys[k_idx], (num_models, d_out),
                              dtype=jnp.float32) * init_scale); k_idx += 1

    x = jax.random.normal(keys[k_idx], (batch, input_size), dtype=jnp.float32)

    out = parallel_ff_forward(x, mean_weights, mean_biases,
                              prec_weights, prec_biases)
    out = jax.tree_util.tree_map(jax.block_until_ready, out)

    ref = parallel_ff_reference(x, mean_weights, mean_biases,
                                prec_weights, prec_biases)

    for name in ("mean", "precision_pre_act", "precision"):
        assert out[name].shape == (batch, num_models, output_size), out[name].shape
        assert jnp.allclose(out[name], ref[name], atol=1e-5, rtol=1e-5), name

    print("KERNEL_OK")
</pallas_src>

<mosaic_0001>
module attributes {stable_mosaic.version = 11 : i64} {
  func.func @kernel(%arg0: i32, %arg1: memref<8x4xf32, #tpu.memory_space<vmem>>, %arg2: memref<1x4x128xf32, #tpu.memory_space<vmem>>, %arg3: memref<1x128x128xf32, #tpu.memory_space<vmem>>, %arg4: memref<1x128x8xf32, #tpu.memory_space<vmem>>, %arg5: memref<1x1x128xf32, #tpu.memory_space<vmem>>, %arg6: memref<1x1x128xf32, #tpu.memory_space<vmem>>, %arg7: memref<1x1x8xf32, #tpu.memory_space<vmem>>, %arg8: memref<1x8x8xf32, #tpu.memory_space<vmem>>, %arg9: memref<1x8x8xf32, #tpu.memory_space<vmem>>) attributes {dimension_semantics = [#tpu.dimension_semantics<parallel>], iteration_bounds = array<i64: 2>, scalar_prefetch = 0 : i64, scratch_operands = 0 : i64, tpu.core_type = #tpu.core_type<tc>, window_params = [{pipeline_mode = #tpu.pipeline_mode<synchronous>, transform_indices = @transform_0, window_bounds = array<i64: 8, 4>}, {transform_indices = @transform_1, window_bounds = array<i64: 1, 4, 128>}, {transform_indices = @transform_2, window_bounds = array<i64: 1, 128, 128>}, {transform_indices = @transform_3, window_bounds = array<i64: 1, 128, 8>}, {transform_indices = @transform_4, window_bounds = array<i64: 1, 1, 128>}, {transform_indices = @transform_5, window_bounds = array<i64: 1, 1, 128>}, {transform_indices = @transform_6, window_bounds = array<i64: 1, 1, 8>}, {transform_indices = @transform_7, window_bounds = array<i64: 1, 8, 8>}, {transform_indices = @transform_8, window_bounds = array<i64: 1, 8, 8>}]} {
    %c0 = arith.constant 0 : index
    %c0_0 = arith.constant 0 : index
    %0 = vector.load %arg1[%c0, %c0_0] : memref<8x4xf32, #tpu.memory_space<vmem>>, vector<8x4xf32>
    %c0_1 = arith.constant 0 : index
    %c0_2 = arith.constant 0 : index
    %c0_3 = arith.constant 0 : index
    %1 = vector.load %arg2[%c0_1, %c0_2, %c0_3] : memref<1x4x128xf32, #tpu.memory_space<vmem>>, vector<1x4x128xf32>
    %2 = vector.shape_cast %1 : vector<1x4x128xf32> to vector<4x128xf32>
    %cst = arith.constant dense<0.000000e+00> : vector<8x128xf32>
    %3 = tpu.matmul %0, %2, %cst {dimension_numbers = #tpu.dot_dimension_numbers<[1], [0], [0], [1], [0, 0, 1, 1], [], []>} : vector<8x4xf32>, vector<4x128xf32>, vector<8x128xf32> -> vector<8x128xf32>
    %c0_4 = arith.constant 0 : index
    %c0_5 = arith.constant 0 : index
    %c0_6 = arith.constant 0 : index
    %4 = vector.load %arg5[%c0_4, %c0_5, %c0_6] : memref<1x1x128xf32, #tpu.memory_space<vmem>>, vector<1x1x128xf32>
    %5 = vector.shape_cast %4 : vector<1x1x128xf32> to vector<1x128xf32>
    %6 = vector.broadcast %5 : vector<1x128xf32> to vector<8x128xf32>
    %7 = arith.addf %3, %6 : vector<8x128xf32>
    %cst_7 = arith.constant 0.000000e+00 : f32
    %8 = vector.broadcast %cst_7 : f32 to vector<8x128xf32>
    %9 = arith.cmpf oge, %7, %8 : vector<8x128xf32>
    %cst_8 = arith.constant 0.00999999977 : f32
    %10 = vector.broadcast %cst_8 : f32 to vector<8x128xf32>
    %11 = arith.mulf %10, %7 : vector<8x128xf32>
    %12 = arith.select %9, %7, %11 : vector<8x128xi1>, vector<8x128xf32>
    %c0_9 = arith.constant 0 : index
    %c0_10 = arith.constant 0 : index
    %c0_11 = arith.constant 0 : index
    %13 = vector.load %arg3[%c0_9, %c0_10, %c0_11] : memref<1x128x128xf32, #tpu.memory_space<vmem>>, vector<1x128x128xf32>
    %14 = vector.shape_cast %13 : vector<1x128x128xf32> to vector<128x128xf32>
    %cst_12 = arith.constant dense<0.000000e+00> : vector<8x128xf32>
    %15 = tpu.matmul %12, %14, %cst_12 {dimension_numbers = #tpu.dot_dimension_numbers<[1], [0], [0], [1], [0, 0, 1, 1], [], []>} : vector<8x128xf32>, vector<128x128xf32>, vector<8x128xf32> -> vector<8x128xf32>
    %c0_13 = arith.constant 0 : index
    %c0_14 = arith.constant 0 : index
    %c0_15 = arith.constant 0 : index
    %16 = vector.load %arg6[%c0_13, %c0_14, %c0_15] : memref<1x1x128xf32, #tpu.memory_space<vmem>>, vector<1x1x128xf32>
    %17 = vector.shape_cast %16 : vector<1x1x128xf32> to vector<1x128xf32>
    %18 = vector.broadcast %17 : vector<1x128xf32> to vector<8x128xf32>
    %19 = arith.addf %15, %18 : vector<8x128xf32>
    %cst_16 = arith.constant 0.000000e+00 : f32
    %20 = vector.broadcast %cst_16 : f32 to vector<8x128xf32>
    %21 = arith.cmpf oge, %19, %20 : vector<8x128xf32>
    %cst_17 = arith.constant 0.00999999977 : f32
    %22 = vector.broadcast %cst_17 : f32 to vector<8x128xf32>
    %23 = arith.mulf %22, %19 : vector<8x128xf32>
    %24 = arith.select %21, %19, %23 : vector<8x128xi1>, vector<8x128xf32>
    %c0_18 = arith.constant 0 : index
    %c0_19 = arith.constant 0 : index
    %c0_20 = arith.constant 0 : index
    %25 = vector.load %arg4[%c0_18, %c0_19, %c0_20] : memref<1x128x8xf32, #tpu.memory_space<vmem>>, vector<1x128x8xf32>
    %26 = vector.shape_cast %25 : vector<1x128x8xf32> to vector<128x8xf32>
    %cst_21 = arith.constant dense<0.000000e+00> : vector<8x8xf32>
    %27 = tpu.matmul %24, %26, %cst_21 {dimension_numbers = #tpu.dot_dimension_numbers<[1], [0], [0], [1], [0, 0, 1, 1], [], []>} : vector<8x128xf32>, vector<128x8xf32>, vector<8x8xf32> -> vector<8x8xf32>
    %c0_22 = arith.constant 0 : index
    %c0_23 = arith.constant 0 : index
    %c0_24 = arith.constant 0 : index
    %28 = vector.load %arg7[%c0_22, %c0_23, %c0_24] : memref<1x1x8xf32, #tpu.memory_space<vmem>>, vector<1x1x8xf32>
    %29 = vector.shape_cast %28 : vector<1x1x8xf32> to vector<1x8xf32>
    %30 = vector.broadcast %29 : vector<1x8xf32> to vector<8x8xf32>
    %31 = arith.addf %27, %30 : vector<8x8xf32>
    %c0_25 = arith.constant 0 : index
    %c0_26 = arith.constant 0 : index
    %c0_27 = arith.constant 0 : index
    %32 = vector.load %arg8[%c0_25, %c0_26, %c0_27] : memref<1x8x8xf32, #tpu.memory_space<vmem>>, vector<1x8x8xf32>
    %33 = vector.shape_cast %32 : vector<1x8x8xf32> to vector<8x8xf32>
    %34 = vector.shape_cast %31 : vector<8x8xf32> to vector<1x8x8xf32>
    tpu.vector_store %arg8[%c0_25, %c0_26, %c0_27], %34 {strides = array<i32>} : memref<1x8x8xf32, #tpu.memory_space<vmem>>, vector<1x8x8xf32>,
    %cst_28 = arith.constant 0.000000e+00 : f32
    %35 = vector.broadcast %cst_28 : f32 to vector<8x8xf32>
    %36 = arith.maximumf %31, %35 : vector<8x8xf32>
    %37 = math.absf %31 : vector<8x8xf32>
    %cst_29 = arith.constant 0.000000e+00 : f32
    %38 = vector.broadcast %cst_29 : f32 to vector<8x8xf32>
    %39 = arith.subf %38, %37 : vector<8x8xf32>
    %40 = math.exp %39 : vector<8x8xf32>
    %41 = math.log1p %40 : vector<8x8xf32>
    %42 = arith.addf %36, %41 : vector<8x8xf32>
    %cst_30 = arith.constant 1.000000e+00 : f32
    %43 = vector.broadcast %cst_30 : f32 to vector<8x8xf32>
    %44 = arith.mulf %42, %43 : vector<8x8xf32>
    %cst_31 = arith.constant 9.99999993E-9 : f32
    %45 = vector.broadcast %cst_31 : f32 to vector<8x8xf32>
    %46 = arith.addf %44, %45 : vector<8x8xf32>
    %c0_32 = arith.constant 0 : index
    %c0_33 = arith.constant 0 : index
    %c0_34 = arith.constant 0 : index
    %47 = vector.load %arg9[%c0_32, %c0_33, %c0_34] : memref<1x8x8xf32, #tpu.memory_space<vmem>>, vector<1x8x8xf32>
    %48 = vector.shape_cast %47 : vector<1x8x8xf32> to vector<8x8xf32>
    %49 = vector.shape_cast %46 : vector<8x8xf32> to vector<1x8x8xf32>
    tpu.vector_store %arg9[%c0_32, %c0_33, %c0_34], %49 {strides = array<i32>} : memref<1x8x8xf32, #tpu.memory_space<vmem>>, vector<1x8x8xf32>,
    return
  }
  func.func @transform_0(%arg0: i32) -> (i32, i32) {
    %c0_i32 = arith.constant 0 : i32
    %c0_i32_0 = arith.constant 0 : i32
    %c0_i32_1 = arith.constant 0 : i32
    return %c0_i32, %c0_i32_0 : i32, i32
  }
  func.func @transform_1(%arg0: i32) -> (i32, i32, i32) {
    %c0_i32 = arith.constant 0 : i32
    %c0_i32_0 = arith.constant 0 : i32
    %c0_i32_1 = arith.constant 0 : i32
    return %arg0, %c0_i32, %c0_i32_0 : i32, i32, i32
  }
  func.func @transform_2(%arg0: i32) -> (i32, i32, i32) {
    %c0_i32 = arith.constant 0 : i32
    %c0_i32_0 = arith.constant 0 : i32
    %c0_i32_1 = arith.constant 0 : i32
    return %arg0, %c0_i32, %c0_i32_0 : i32, i32, i32
  }
  func.func @transform_3(%arg0: i32) -> (i32, i32, i32) {
    %c0_i32 = arith.constant 0 : i32
    %c0_i32_0 = arith.constant 0 : i32
    %c0_i32_1 = arith.constant 0 : i32
    return %arg0, %c0_i32, %c0_i32_0 : i32, i32, i32
  }
  func.func @transform_4(%arg0: i32) -> (i32, i32, i32) {
    %c0_i32 = arith.constant 0 : i32
    %c0_i32_0 = arith.constant 0 : i32
    %c0_i32_1 = arith.constant 0 : i32
    return %arg0, %c0_i32, %c0_i32_0 : i32, i32, i32
  }
  func.func @transform_5(%arg0: i32) -> (i32, i32, i32) {
    %c0_i32 = arith.constant 0 : i32
    %c0_i32_0 = arith.constant 0 : i32
    %c0_i32_1 = arith.constant 0 : i32
    return %arg0, %c0_i32, %c0_i32_0 : i32, i32, i32
  }
  func.func @transform_6(%arg0: i32) -> (i32, i32, i32) {
    %c0_i32 = arith.constant 0 : i32
    %c0_i32_0 = arith.constant 0 : i32
    %c0_i32_1 = arith.constant 0 : i32
    return %arg0, %c0_i32, %c0_i32_0 : i32, i32, i32
  }
  func.func @transform_7(%arg0: i32) -> (i32, i32, i32) {
    %c0_i32 = arith.constant 0 : i32
    %c0_i32_0 = arith.constant 0 : i32
    %c0_i32_1 = arith.constant 0 : i32
    return %arg0, %c0_i32, %c0_i32_0 : i32, i32, i32
  }
  func.func @transform_8(%arg0: i32) -> (i32, i32, i32) {
    %c0_i32 = arith.constant 0 : i32
    %c0_i32_0 = arith.constant 0 : i32
    %c0_i32_1 = arith.constant 0 : i32
    return %arg0, %c0_i32, %c0_i32_0 : i32, i32, i32
  }
}

</mosaic_0001>

<llo_original>
// kernel: tpu_custom_call.1
$region0: #{tpu_custom_call.1}
  #allocation0 [shape = 'u32[]', space=smem, size = 0x4, offset = 0x4, fixed_abs, tag = 'smem constant byte address 0x4 - core index']
  #allocation1 [shape = 'u32[72,128]{1,0:T(1,128)}', space=vmem, size = 0x9000, scoped, tag = 'internal scratch']
  %s0 = inlined_call_operand.vmem [shape: f32[8,4], index: 0, kind: input, shape index: {}]
  %s1 = inlined_call_operand.vmem [shape: f32[2,4,128], index: 1, kind: input, shape index: {}]
  %s2 = inlined_call_operand.vmem [shape: f32[2,128,128], index: 2, kind: input, shape index: {}]
  %s3 = inlined_call_operand.vmem [shape: f32[2,128,8], index: 3, kind: input, shape index: {}]
  %s4 = inlined_call_operand.vmem [shape: f32[2,1,128], index: 4, kind: input, shape index: {}]
  %s5 = inlined_call_operand.vmem [shape: f32[2,1,128], index: 5, kind: input, shape index: {}]
  %s6 = inlined_call_operand.vmem [shape: f32[2,1,8], index: 6, kind: input, shape index: {}]
  %s7 = inlined_call_operand.hbm [shape: f32[2,8,8], index: 7, kind: output, shape index: {0}]
  %s8 = inlined_call_operand.hbm [shape: f32[2,8,8], index: 8, kind: output, shape index: {1}]
  %9 = xla_tuple %s7, %s8
  %s10 = sld [smem:[#allocation0]]
  $region69: #{tpu_custom_call.1} parent=0
    _
  %s12 = ssub.s32 1, %s10
  %s13 = scalar_select 0, %s12, %s10
  $region1: #{tpu_custom_call.1} parent=0
    #allocation2 [shape = 'u8[8192]{0}', space=vmem, size = 0x2000, scoped, tag = 'output window, operand 0']
    #allocation3 [shape = 's32[2]{0}', space=sflag, size = 0x8, scoped, tag = 'scoped memory for tpu_custom_call.1']
    #allocation4 [shape = 'u8[8192]{0}', space=vmem, size = 0x2000, scoped, tag = 'output window, operand 1']
    #allocation5 [shape = 's32[2]{0}', space=sflag, size = 0x8, scoped, tag = 'scoped memory for tpu_custom_call.1']
    %14 = vsyncpa [#allocation3], 0
    %s15 = scalar_lea.sflag [#allocation3], 1
    %16 = vsyncpa %s15, 0
    %17 = vsyncpa [#allocation5], 0
    %s18 = scalar_lea.sflag [#allocation5], 1
    %19 = vsyncpa %s18, 0
    loop: start=0, step=1, limit=4
    $region2: #{tpu_custom_call.1} parent=1 // loop_pre_header
      _
    $region3: #{tpu_custom_call.1} parent=1 // loop_header
      %s21 = sphi 0, %s25
      %p22 = scmp.ge.s32.totalorder %s21, 4
      %s29 = sphi 0, %s29
      %s31 = sphi 0, %s29
      %s32 = sphi 0, %s31
      %s46 = sphi 0, %s32
      %s52 = sphi 0, %s54
      %s55 = sphi 0, %s52
      %s56 = sphi 0, %s55
      %s72 = sphi 0, %s56
      %s78 = sphi 0, %s80
      %s81 = sphi 0, %s78
      %s82 = sphi 0, %s81
      %s98 = sphi 0, %s82
      %s104 = sphi 0, %s106
      %s107 = sphi 0, %s104
      %s108 = sphi 0, %s107
      %s124 = sphi 0, %s108
      %s130 = sphi 0, %s132
      %s133 = sphi 0, %s130
      %s134 = sphi 0, %s133
      %s150 = sphi 0, %s134
      %s156 = sphi 0, %s158
      %s159 = sphi 0, %s156
      %s160 = sphi 0, %s159
      %s176 = sphi 0, %s160
      %s182 = sphi 0, %s184
      %s185 = sphi 0, %s182
      %s186 = sphi 0, %s185
      %s202 = sphi 0, %s186
      %s208 = sphi 0, %s210
      %s211 = sphi 0, %s208
      %s212 = sphi 0, %s211
      %s228 = sphi 0, %s212
      %s234 = sphi 0, %s236
      %s237 = sphi 0, %s234
      %s238 = sphi 0, %s237
      %s254 = sphi 0, %s238
    $region4: #{tpu_custom_call.1} parent=1 // loop_header_branch
      %24 = sbr.rel (%p22) target = $region8
    $region5: #{tpu_custom_call.1} parent=1 // loop_body
      %s26 = ssub.s32 %s21, 1
      %s27 = ssub.s32 %s21, 2
      %s28 = sadd.s32 %s21, 1
      %s30 = sadd.s32 %s29, 1
      %p33 = scmp.eq.s32.totalorder %s21, 1
      %p34 = scmp.ne.s32.totalorder %s29, %s31
      %p35 = scmp.eq.s32.totalorder %s21, 0
      %p36 = por %p34, %p35
      %p37 = scmp.ne.s32.totalorder %s29, %s31
      %p38 = scmp.eq.s32.totalorder %s26, 1
      %p39 = por %p37, %p38
      %p40 = scmp.ne.s32.totalorder %s31, %s32
      %p41 = scmp.eq.s32.totalorder %s26, 0
      %p42 = por %p40, %p41
      %p43 = scmp.ne.s32.totalorder %s31, %s32
      %p44 = scmp.eq.s32.totalorder %s27, 1
      %p45 = por %p43, %p44
      %p47 = scmp.ne.s32.totalorder %s32, %s46
      %p48 = scmp.eq.s32.totalorder %s27, 0
      %p49 = por %p47, %p48
      %s50 = ssub.s32 %s21, %s28
      %p51 = scmp.eq.s32.totalorder %s50, 0
      %s53 = sadd.s32 %s52, 1
      %s54 = scalar_select %p51, %s52, %s53
      %p57 = pneg %p51
      %p58 = scmp.eq.s32.totalorder %s21, 1
      %p59 = por %p57, %p58
      %p60 = scmp.ne.s32.totalorder %s52, %s55
      %p61 = scmp.eq.s32.totalorder %s21, 0
      %p62 = por %p60, %p61
      %p63 = scmp.ne.s32.totalorder %s52, %s55
      %p64 = scmp.eq.s32.totalorder %s26, 1
      %p65 = por %p63, %p64
      %p66 = scmp.ne.s32.totalorder %s55, %s56
      %p67 = scmp.eq.s32.totalorder %s26, 0
      %p68 = por %p66, %p67
      %p69 = scmp.ne.s32.totalorder %s55, %s56
      %p70 = scmp.eq.s32.totalorder %s27, 1
      %p71 = por %p69, %p70
      %p73 = scmp.ne.s32.totalorder %s56, %s72
      %p74 = scmp.eq.s32.totalorder %s27, 0
      %p75 = por %p73, %p74
      %s76 = ssub.s32 %s21, %s28
      %p77 = scmp.eq.s32.totalorder %s76, 0
      %s79 = sadd.s32 %s78, 1
      %s80 = scalar_select %p77, %s78, %s79
      %p83 = pneg %p77
      %p84 = scmp.eq.s32.totalorder %s21, 1
      %p85 = por %p83, %p84
      %p86 = scmp.ne.s32.totalorder %s78, %s81
      %p87 = scmp.eq.s32.totalorder %s21, 0
      %p88 = por %p86, %p87
      %p89 = scmp.ne.s32.totalorder %s78, %s81
      %p90 = scmp.eq.s32.totalorder %s26, 1
      %p91 = por %p89, %p90
      %p92 = scmp.ne.s32.totalorder %s81, %s82
      %p93 = scmp.eq.s32.totalorder %s26, 0
      %p94 = por %p92, %p93
      %p95 = scmp.ne.s32.totalorder %s81, %s82
      %p96 = scmp.eq.s32.totalorder %s27, 1
      %p97 = por %p95, %p96
      %p99 = scmp.ne.s32.totalorder %s82, %s98
      %p100 = scmp.eq.s32.totalorder %s27, 0
      %p101 = por %p99, %p100
      %s102 = ssub.s32 %s21, %s28
      %p103 = scmp.eq.s32.totalorder %s102, 0
      %s105 = sadd.s32 %s104, 1
      %s106 = scalar_select %p103, %s104, %s105
      %p109 = pneg %p103
      %p110 = scmp.eq.s32.totalorder %s21, 1
      %p111 = por %p109, %p110
      %p112 = scmp.ne.s32.totalorder %s104, %s107
      %p113 = scmp.eq.s32.totalorder %s21, 0
      %p114 = por %p112, %p113
      %p115 = scmp.ne.s32.totalorder %s104, %s107
      %p116 = scmp.eq.s32.totalorder %s26, 1
      %p117 = por %p115, %p116
      %p118 = scmp.ne.s32.totalorder %s107, %s108
      %p119 = scmp.eq.s32.totalorder %s26, 0
      %p120 = por %p118, %p119
      %p121 = scmp.ne.s32.totalorder %s107, %s108
      %p122 = scmp.eq.s32.totalorder %s27, 1
      %p123 = por %p121, %p122
      %p125 = scmp.ne.s32.totalorder %s108, %s124
      %p126 = scmp.eq.s32.totalorder %s27, 0
      %p127 = por %p125, %p126
      %s128 = ssub.s32 %s21, %s28
      %p129 = scmp.eq.s32.totalorder %s128, 0
      %s131 = sadd.s32 %s130, 1
      %s132 = scalar_select %p129, %s130, %s131
      %p135 = pneg %p129
      %p136 = scmp.eq.s32.totalorder %s21, 1
      %p137 = por %p135, %p136
      %p138 = scmp.ne.s32.totalorder %s130, %s133
      %p139 = scmp.eq.s32.totalorder %s21, 0
      %p140 = por %p138, %p139
      %p141 = scmp.ne.s32.totalorder %s130, %s133
      %p142 = scmp.eq.s32.totalorder %s26, 1
      %p143 = por %p141, %p142
      %p144 = scmp.ne.s32.totalorder %s133, %s134
      %p145 = scmp.eq.s32.totalorder %s26, 0
      %p146 = por %p144, %p145
      %p147 = scmp.ne.s32.totalorder %s133, %s134
      %p148 = scmp.eq.s32.totalorder %s27, 1
      %p149 = por %p147, %p148
      %p151 = scmp.ne.s32.totalorder %s134, %s150
      %p152 = scmp.eq.s32.totalorder %s27, 0
      %p153 = por %p151, %p152
      %s154 = ssub.s32 %s21, %s28
      %p155 = scmp.eq.s32.totalorder %s154, 0
      %s157 = sadd.s32 %s156, 1
      %s158 = scalar_select %p155, %s156, %s157
      %p161 = pneg %p155
      %p162 = scmp.eq.s32.totalorder %s21, 1
      %p163 = por %p161, %p162
      %p164 = scmp.ne.s32.totalorder %s156, %s159
      %p165 = scmp.eq.s32.totalorder %s21, 0
      %p166 = por %p164, %p165
      %p167 = scmp.ne.s32.totalorder %s156, %s159
      %p168 = scmp.eq.s32.totalorder %s26, 1
      %p169 = por %p167, %p168
      %p170 = scmp.ne.s32.totalorder %s159, %s160
      %p171 = scmp.eq.s32.totalorder %s26, 0
      %p172 = por %p170, %p171
      %p173 = scmp.ne.s32.totalorder %s159, %s160
      %p174 = scmp.eq.s32.totalorder %s27, 1
      %p175 = por %p173, %p174
      %p177 = scmp.ne.s32.totalorder %s160, %s176
      %p178 = scmp.eq.s32.totalorder %s27, 0
      %p179 = por %p177, %p178
      %s180 = ssub.s32 %s21, %s28
      %p181 = scmp.eq.s32.totalorder %s180, 0
      %s183 = sadd.s32 %s182, 1
      %s184 = scalar_select %p181, %s182, %s183
      %p187 = pneg %p181
      %p188 = scmp.eq.s32.totalorder %s21, 1
      %p189 = por %p187, %p188
      %p190 = scmp.ne.s32.totalorder %s182, %s185
      %p191 = scmp.eq.s32.totalorder %s21, 0
      %p192 = por %p190, %p191
      %p193 = scmp.ne.s32.totalorder %s182, %s185
      %p194 = scmp.eq.s32.totalorder %s26, 1
      %p195 = por %p193, %p194
      %p196 = scmp.ne.s32.totalorder %s185, %s186
      %p197 = scmp.eq.s32.totalorder %s26, 0
      %p198 = por %p196, %p197
      %p199 = scmp.ne.s32.totalorder %s185, %s186
      %p200 = scmp.eq.s32.totalorder %s27, 1
      %p201 = por %p199, %p200
      %p203 = scmp.ne.s32.totalorder %s186, %s202
      %p204 = scmp.eq.s32.totalorder %s27, 0
      %p205 = por %p203, %p204
      %s206 = ssub.s32 %s21, %s28
      %p207 = scmp.eq.s32.totalorder %s206, 0
      %s209 = sadd.s32 %s208, 1
      %s210 = scalar_select %p207, %s208, %s209
      %p213 = pneg %p207
      %p214 = scmp.eq.s32.totalorder %s21, 1
      %p215 = por %p213, %p214
      %p216 = scmp.ne.s32.totalorder %s208, %s211
      %p217 = scmp.eq.s32.totalorder %s21, 0
      %p218 = por %p216, %p217
      %p219 = scmp.ne.s32.totalorder %s208, %s211
      %p220 = scmp.eq.s32.totalorder %s26, 1
      %p221 = por %p219, %p220
      %p222 = scmp.ne.s32.totalorder %s211, %s212
      %p223 = scmp.eq.s32.totalorder %s26, 0
      %p224 = por %p222, %p223
      %p225 = scmp.ne.s32.totalorder %s211, %s212
      %p226 = scmp.eq.s32.totalorder %s27, 1
      %p227 = por %p225, %p226
      %p229 = scmp.ne.s32.totalorder %s212, %s228
      %p230 = scmp.eq.s32.totalorder %s27, 0
      %p231 = por %p229, %p230
      %s232 = ssub.s32 %s21, %s28
      %p233 = scmp.eq.s32.totalorder %s232, 0
      %s235 = sadd.s32 %s234, 1
      %s236 = scalar_select %p233, %s234, %s235
      %p239 = pneg %p233
      %p240 = scmp.eq.s32.totalorder %s21, 1
      %p241 = por %p239, %p240
      %p242 = scmp.ne.s32.totalorder %s234, %s237
      %p243 = scmp.eq.s32.totalorder %s21, 0
      %p244 = por %p242, %p243
      %p245 = scmp.ne.s32.totalorder %s234, %s237
      %p246 = scmp.eq.s32.totalorder %s26, 1
      %p247 = por %p245, %p246
      %p248 = scmp.ne.s32.totalorder %s237, %s238
      %p249 = scmp.eq.s32.totalorder %s26, 0
      %p250 = por %p248, %p249
      %p251 = scmp.ne.s32.totalorder %s237, %s238
      %p252 = scmp.eq.s32.totalorder %s27, 1
      %p253 = por %p251, %p252
      %p255 = scmp.ne.s32.totalorder %s238, %s254
      %p256 = scmp.eq.s32.totalorder %s27, 0
      %p257 = por %p255, %p256
      %p258 = scmp.le.s32.totalorder 1, %s21
      %p259 = scmp.lt.s32.totalorder %s21, 3
      %p260 = pnand %p258, %p259
      %p261 = pneg %p260
      // Predicated region
      $region9: #{tpu_custom_call.1} parent=5 // pred_check
        _
      $region10: #{tpu_custom_call.1} parent=5 // pred_check_branch
        %263 = sbr.rel (%p260) target = $region12
      $region11: #{tpu_custom_call.1} parent=5 // pred_region
        %s264 = ssub.s32 %s21, 1
        // Predicated region
        $region13: #{tpu_custom_call.1} parent=11 // pred_check
          %p265 = pneg %p42
        $region14: #{tpu_custom_call.1} parent=11 // pred_check_branch
          %267 = sbr.rel (%p265) target = $region16
        $region15: #{tpu_custom_call.1} parent=11 // pred_region
          _
        $region16: #{tpu_custom_call.1} parent=11 // pred_fallthru
          _
      $region12: #{tpu_custom_call.1} parent=5 // pred_fallthru
        _
      %p268 = scmp.lt.s32.totalorder %s21, 2
      // Predicated region
      $region17: #{tpu_custom_call.1} parent=5 // pred_check
        %p269 = pneg %p268
      $region18: #{tpu_custom_call.1} parent=5 // pred_check_branch
        %271 = sbr.rel (%p269) target = $region20
      $region19: #{tpu_custom_call.1} parent=5 // pred_region
        // Predicated region
        $region21: #{tpu_custom_call.1} parent=19 // pred_check
          %p272 = pneg %p62
        $region22: #{tpu_custom_call.1} parent=19 // pred_check_branch
          %274 = sbr.rel (%p272) target = $region24
        $region23: #{tpu_custom_call.1} parent=19 // pred_region
          %p275 = scmp.lt.s32.totalorder %s21, 1
          %s276 = scalar_select %p275, %s21, 1
          %s277 = smul.addr %s276, 4
          %s278 = scalar_lea.vmem %s1, %s277
        $region24: #{tpu_custom_call.1} parent=19 // pred_fallthru
          _
        // Predicated region
        $region25: #{tpu_custom_call.1} parent=19 // pred_check
          %p279 = pneg %p88
        $region26: #{tpu_custom_call.1} parent=19 // pred_check_branch
          %281 = sbr.rel (%p279) target = $region28
        $region27: #{tpu_custom_call.1} parent=19 // pred_region
          %p282 = scmp.lt.s32.totalorder %s21, 1
          %s283 = scalar_select %p282, %s21, 1
          %s284 = smul.addr %s283, 16
          %s285 = smul.addr %s284, 8
          %s286 = scalar_lea.vmem %s2, %s285
        $region28: #{tpu_custom_call.1} parent=19 // pred_fallthru
          _
        // Predicated region
        $region29: #{tpu_custom_call.1} parent=19 // pred_check
          %p287 = pneg %p114
        $region30: #{tpu_custom_call.1} parent=19 // pred_check_branch
          %289 = sbr.rel (%p287) target = $region32
        $region31: #{tpu_custom_call.1} parent=19 // pred_region
          %p290 = scmp.lt.s32.totalorder %s21, 1
          %s291 = scalar_select %p290, %s21, 1
          %s292 = smul.addr %s291, 16
          %s293 = smul.addr %s292, 8
          %s294 = scalar_lea.vmem %s3, %s293
        $region32: #{tpu_custom_call.1} parent=19 // pred_fallthru
          _
        // Predicated region
        $region33: #{tpu_custom_call.1} parent=19 // pred_check
          %p295 = pneg %p140
        $region34: #{tpu_custom_call.1} parent=19 // pred_check_branch
          %297 = sbr.rel (%p295) target = $region36
        $region35: #{tpu_custom_call.1} parent=19 // pred_region
          %p298 = scmp.lt.s32.totalorder %s21, 1
          %s299 = scalar_select %p298, %s21, 1
          %s300 = scalar_lea.vmem %s4, %s299
        $region36: #{tpu_custom_call.1} parent=19 // pred_fallthru
          _
        // Predicated region
        $region37: #{tpu_custom_call.1} parent=19 // pred_check
          %p301 = pneg %p166
        $region38: #{tpu_custom_call.1} parent=19 // pred_check_branch
          %303 = sbr.rel (%p301) target = $region40
        $region39: #{tpu_custom_call.1} parent=19 // pred_region
          %p304 = scmp.lt.s32.totalorder %s21, 1
          %s305 = scalar_select %p304, %s21, 1
          %s306 = scalar_lea.vmem %s5, %s305
        $region40: #{tpu_custom_call.1} parent=19 // pred_fallthru
          _
        // Predicated region
        $region41: #{tpu_custom_call.1} parent=19 // pred_check
          %p307 = pneg %p192
        $region42: #{tpu_custom_call.1} parent=19 // pred_check_branch
          %309 = sbr.rel (%p307) target = $region44
        $region43: #{tpu_custom_call.1} parent=19 // pred_region
          %p310 = scmp.lt.s32.totalorder %s21, 1
          %s311 = scalar_select %p310, %s21, 1
          %s312 = scalar_lea.vmem %s6, %s311
        $region44: #{tpu_custom_call.1} parent=19 // pred_fallthru
          _
      $region20: #{tpu_custom_call.1} parent=5 // pred_fallthru
        _
      %p313 = scmp.le.s32.totalorder 1, %s21
      %p314 = scmp.lt.s32.totalorder %s21, 3
      %p315 = pnand %p313, %p314
      %p316 = pneg %p315
      // Predicated region
      $region45: #{tpu_custom_call.1} parent=5 // pred_check
        _
      $region46: #{tpu_custom_call.1} parent=5 // pred_check_branch
        %318 = sbr.rel (%p315) target = $region48
      $region47: #{tpu_custom_call.1} parent=5 // pred_region
        %s319 = ssub.s32 %s21, 1
        %p320 = pneg %p42
        %p321 = pneg %p39
        %p322 = scmp.lt.s32.totalorder %s26, 1
        %s323 = scalar_select %p322, %s26, 1
        %s324 = smul.addr %s323, 4
        %s325 = scalar_lea.vmem %s1, %s324
        %p326 = pneg %p68
        %p327 = pneg %p65
        %p328 = scmp.lt.s32.totalorder %s26, 1
        %s329 = scalar_select %p328, %s26, 1
        %s330 = smul.addr %s329, 16
        %s331 = smul.addr %s330, 8
        %s332 = scalar_lea.vmem %s2, %s331
        %p333 = pneg %p94
        %p334 = pneg %p91
        %p335 = scmp.lt.s32.totalorder %s26, 1
        %s336 = scalar_select %p335, %s26, 1
        %s337 = smul.addr %s336, 16
        %s338 = smul.addr %s337, 8
        %s339 = scalar_lea.vmem %s3, %s338
        %p340 = pneg %p120
        %p341 = pneg %p117
        %p342 = scmp.lt.s32.totalorder %s26, 1
        %s343 = scalar_select %p342, %s26, 1
        %s344 = scalar_lea.vmem %s4, %s343
        %p345 = pneg %p146
        %p346 = pneg %p143
        %p347 = scmp.lt.s32.totalorder %s26, 1
        %s348 = scalar_select %p347, %s26, 1
        %s349 = scalar_lea.vmem %s5, %s348
        %p350 = pneg %p172
        %p351 = pneg %p169
        %p352 = scmp.lt.s32.totalorder %s26, 1
        %s353 = scalar_select %p352, %s26, 1
        %s354 = scalar_lea.vmem %s6, %s353
        %p355 = pneg %p198
        %p356 = pneg %p195
        %p357 = pneg %p224
        %p358 = pneg %p221
        %s359 = sand.u32 %s211, 1
        %s360 = scalar_lea.sflag [#allocation3], %s359
        %s361 = sand.u32 %s211, 1
        %s362 = smul.addr %s361, 8
        %s363 = scalar_lea.vmem [#allocation2], %s362
        %p364 = pneg %p250
        %p365 = pneg %p247
        %s366 = sand.u32 %s237, 1
        %s367 = scalar_lea.sflag [#allocation5], %s366
        %s368 = sand.u32 %s237, 1
        %s369 = smul.addr %s368, 8
        %s370 = scalar_lea.vmem [#allocation4], %s369
        %p371 = scmp.lt.s32.totalorder %s26, 1
        %s372 = scalar_select %p371, %s26, 1
        %s373 = smul.addr %s372, 4
        %s374 = scalar_lea.vmem %s1, %s373
        %p375 = scmp.lt.s32.totalorder %s26, 1
        %s376 = scalar_select %p375, %s26, 1
        %s377 = smul.addr %s376, 16
        %s378 = smul.addr %s377, 8
        %s379 = scalar_lea.vmem %s2, %s378
        %p380 = scmp.lt.s32.totalorder %s26, 1
        %s381 = scalar_select %p380, %s26, 1
        %s382 = smul.addr %s381, 16
        %s383 = smul.addr %s382, 8
        %s384 = scalar_lea.vmem %s3, %s383
        %p385 = scmp.lt.s32.totalorder %s26, 1
        %s386 = scalar_select %p385, %s26, 1
        %s387 = scalar_lea.vmem %s4, %s386
        %p388 = scmp.lt.s32.totalorder %s26, 1
        %s389 = scalar_select %p388, %s26, 1
        %s390 = scalar_lea.vmem %s5, %s389
        %p391 = scmp.lt.s32.totalorder %s26, 1
        %s392 = scalar_select %p391, %s26, 1
        %s393 = scalar_lea.vmem %s6, %s392
        %v394 = vld [vmem:[%s0] sm:$0xff]
        %v395 = vld [vmem:[%s374] sm:$0xf]
        %v396 = vld [vmem:[%s387] sm:$0x1]
        %v398 = vperm.slane %v396, 0
        %vm400 = vcmask 31744
        %v402 = vsel %vm400, %v394, 0
        %vm404 = vcmask 1043456
        %v406 = vsel %vm404, %v395, 0
        %408 = vmatpush.msra.mxu0 0.0
        %409 = vmatpush.msra.mxu0 0.0
        %410 = vmatpush.msra.mxu0 0.0
        %411 = vmatpush.msra.mxu0 0.0
        %412 = vmatpush.msra.mxu0 0.0
        %413 = vmatpush.msra.mxu0 0.0
        %414 = vmatpush.msra.mxu0 0.0
        %415 = vmatpush.msra.mxu0 0.0
        %416 = vmatpush.msra.mxu0 0.0
        %417 = vmatpush.msra.mxu0 0.0
        %418 = vmatpush.msra.mxu0 0.0
        %419 = vmatpush.msra.mxu0 0.0
        %420 = vmatpush.msra.mxu0 0.0
        %421 = vmatpush.msra.mxu0 0.0
        %422 = vmatpush.msra.mxu0 0.0
        %423 = vmatpush.msra.mxu0 %v406
        %424 = vmatmul.f32.gmra.mxu0 %v402
        %v425 = vpop.f32.mrf.mxu0
        %v426 = vadd.f32 %v398, %v425
        %427 = vdwg.mxu0
        %vm428 = vcmp.ge.f32.partialorder %v426, 0.0
        %v429 = vmul.f32 %v426, 0.01
        %v430 = vsel %vm428, %v426, %v429
        %v431 = vld [vmem:[%s379] sm:$0xff]
        %v432 = vld [vmem:[%s379 + $0x8] sm:$0xff]
        %v433 = vld [vmem:[%s379 + $0x10] sm:$0xff]
        %v434 = vld [vmem:[%s379 + $0x18] sm:$0xff]
        %v435 = vld [vmem:[%s379 + $0x20] sm:$0xff]
        %v436 = vld [vmem:[%s379 + $0x28] sm:$0xff]
        %v437 = vld [vmem:[%s379 + $0x30] sm:$0xff]
        %v438 = vld [vmem:[%s379 + $0x38] sm:$0xff]
        %v439 = vld [vmem:[%s379 + $0x40] sm:$0xff]
        %v440 = vld [vmem:[%s379 + $0x48] sm:$0xff]
        %v441 = vld [vmem:[%s379 + $0x50] sm:$0xff]
        %v442 = vld [vmem:[%s379 + $0x58] sm:$0xff]
        %v443 = vld [vmem:[%s379 + $0x60] sm:$0xff]
        %v444 = vld [vmem:[%s379 + $0x68] sm:$0xff]
        %v445 = vld [vmem:[%s379 + $0x70] sm:$0xff]
        %v446 = vld [vmem:[%s379 + $0x78] sm:$0xff]
        %v447 = vld [vmem:[%s390] sm:$0x1]
        %v449 = vperm.slane %v447, 0
        %451 = vmatpush.msra.mxu0 %v446
        %452 = vmatpush.msra.mxu0 %v445
        %453 = vmatpush.msra.mxu0 %v444
        %454 = vmatpush.msra.mxu0 %v443
        %455 = vmatpush.msra.mxu0 %v442
        %456 = vmatpush.msra.mxu0 %v441
        %457 = vmatpush.msra.mxu0 %v440
        %458 = vmatpush.msra.mxu0 %v439
        %459 = vmatpush.msra.mxu0 %v438
        %460 = vmatpush.msra.mxu0 %v437
        %461 = vmatpush.msra.mxu0 %v436
        %462 = vmatpush.msra.mxu0 %v435
        %463 = vmatpush.msra.mxu0 %v434
        %464 = vmatpush.msra.mxu0 %v433
        %465 = vmatpush.msra.mxu0 %v432
        %466 = vmatpush.msra.mxu0 %v431
        %467 = vmatmul.f32.gmra.mxu0 %v430
        %v468 = vpop.f32.mrf.mxu0
        %v469 = vadd.f32 %v449, %v468
        %470 = vdwg.mxu0
        %vm471 = vcmp.ge.f32.partialorder %v469, 0.0
        %v472 = vmul.f32 %v469, 0.01
        %v473 = vsel %vm471, %v469, %v472
        %v474 = vld [vmem:[%s384] sm:$0xff]
        %v475 = vld [vmem:[%s384 + $0x8] sm:$0xff]
        %v476 = vld [vmem:[%s384 + $0x10] sm:$0xff]
        %v477 = vld [vmem:[%s384 + $0x18] sm:$0xff]
        %v478 = vld [vmem:[%s384 + $0x20] sm:$0xff]
        %v479 = vld [vmem:[%s384 + $0x28] sm:$0xff]
        %v480 = vld [vmem:[%s384 + $0x30] sm:$0xff]
        %v481 = vld [vmem:[%s384 + $0x38] sm:$0xff]
        %v482 = vld [vmem:[%s384 + $0x40] sm:$0xff]
        %v483 = vld [vmem:[%s384 + $0x48] sm:$0xff]
        %v484 = vld [vmem:[%s384 + $0x50] sm:$0xff]
        %v485 = vld [vmem:[%s384 + $0x58] sm:$0xff]
        %v486 = vld [vmem:[%s384 + $0x60] sm:$0xff]
        %v487 = vld [vmem:[%s384 + $0x68] sm:$0xff]
        %v488 = vld [vmem:[%s384 + $0x70] sm:$0xff]
        %v489 = vld [vmem:[%s384 + $0x78] sm:$0xff]
        %v490 = vld [vmem:[%s393] sm:$0x1]
        %v492 = vperm.slane %v490, 0
        %494 = vmatpush.msra.mxu0 %v489
        %495 = vmatpush.msra.mxu0 %v488
        %496 = vmatpush.msra.mxu0 %v487
        %497 = vmatpush.msra.mxu0 %v486
        %498 = vmatpush.msra.mxu0 %v485
        %499 = vmatpush.msra.mxu0 %v484
        %500 = vmatpush.msra.mxu0 %v483
        %501 = vmatpush.msra.mxu0 %v482
        %502 = vmatpush.msra.mxu0 %v481
        %503 = vmatpush.msra.mxu0 %v480
        %504 = vmatpush.msra.mxu0 %v479
        %505 = vmatpush.msra.mxu0 %v478
        %506 = vmatpush.msra.mxu0 %v477
        %507 = vmatpush.msra.mxu0 %v476
        %508 = vmatpush.msra.mxu0 %v475
        %509 = vmatpush.msra.mxu0 %v474
        %510 = vmatmul.f32.gmra.mxu0 %v473
        %v511 = vpop.f32.mrf.mxu0
        %v512 = vadd.f32 %v492, %v511
        %513 = vdwg.mxu0
        %vm514 = vcmask 64512
        %515 = vst.msk [vmem:[%s363] sm:$0xff] %vm514, %v512
        %v516 = vmax.f32 %v512, 0.0
        %v517 = vand.u32 2147483647, %v512
        %v518 = vsub.f32 0.0, %v517
        %v519 = vmul.f32 %v518, 1.442695
        %v520 = vpow.pop %v519
        %v521 = vadd.f32 %v520, 1.0
        %v522 = vlog2.pop %v521
        %v523 = vmul.f32 %v522, 0.6931472
        %v524 = vmul.f32 -0.5, %v520
        %v525 = vadd.f32 %v524, 1.0
        %v526 = vmul.f32 %v525, %v520
        %v527 = vand.u32 2147483647, %v520
        %vm528 = vcmp.lt.f32.partialorder %v527, 0.0004427343
        %v529 = vsel %vm528, %v526, %v523
        %v530 = vadd.f32 %v516, %v529
        %v531 = vadd.f32 %v530, 1e-08
        %532 = vst.msk [vmem:[%s370] sm:$0xff] %vm514, %v531
        %s533 = sand.u32 %s211, 1
        %s534 = scalar_lea.sflag [#allocation3], %s533
        %s535 = sand.u32 %s211, 1
        %s536 = smul.addr %s535, 8
        %s537 = scalar_lea.vmem [#allocation2], %s536
        %s538 = sand.u32 %s237, 1
        %s539 = scalar_lea.sflag [#allocation5], %s538
        %s540 = sand.u32 %s237, 1
        %s541 = smul.addr %s540, 8
        %s542 = scalar_lea.vmem [#allocation4], %s541
        // Predicated region
        $region49: #{tpu_custom_call.1} parent=47 // pred_check
          %p543 = pneg %p221
        $region50: #{tpu_custom_call.1} parent=47 // pred_check_branch
          %545 = sbr.rel (%p543) target = $region52
        $region51: #{tpu_custom_call.1} parent=47 // pred_region
          %547 = vsyncadd %s534, 0
          %s548 = smul.addr %s26, 8
          %s549 = scalar_lea.hbm %s7, %s548
          %s551 = sshll.u32 %s537, 4
          %s552 = int_to_ptr.vmem [resolvable:$true] %s551
          %s553 = sshll.u32 %s549, 4
          %s554 = int_to_ptr.hbm [resolvable:$true] %s553
          %556 = dma.vmem_to_hbm [thread:$0]  %s552, 128, %s554, %s534
        $region52: #{tpu_custom_call.1} parent=47 // pred_fallthru
          _
        // Predicated region
        $region53: #{tpu_custom_call.1} parent=47 // pred_check
          %p557 = pneg %p247
        $region54: #{tpu_custom_call.1} parent=47 // pred_check_branch
          %559 = sbr.rel (%p557) target = $region56
        $region55: #{tpu_custom_call.1} parent=47 // pred_region
          %561 = vsyncadd %s539, 0
          %s562 = smul.addr %s26, 8
          %s563 = scalar_lea.hbm %s8, %s562
          %s565 = sshll.u32 %s542, 4
          %s566 = int_to_ptr.vmem [resolvable:$true] %s565
          %s567 = sshll.u32 %s563, 4
          %s568 = int_to_ptr.hbm [resolvable:$true] %s567
          %570 = dma.vmem_to_hbm [thread:$0]  %s566, 128, %s568, %s539
        $region56: #{tpu_custom_call.1} parent=47 // pred_fallthru
          _
      $region48: #{tpu_custom_call.1} parent=5 // pred_fallthru
        _
      %p571 = scmp.le.s32.totalorder 2, %s21
      // Predicated region
      $region57: #{tpu_custom_call.1} parent=5 // pred_check
        %p572 = pneg %p571
      $region58: #{tpu_custom_call.1} parent=5 // pred_check_branch
        %574 = sbr.rel (%p572) target = $region60
      $region59: #{tpu_custom_call.1} parent=5 // pred_region
        %s575 = ssub.s32 %s21, 2
        // Predicated region
        $region61: #{tpu_custom_call.1} parent=59 // pred_check
          %p576 = pneg %p227
        $region62: #{tpu_custom_call.1} parent=59 // pred_check_branch
          %578 = sbr.rel (%p576) target = $region64
        $region63: #{tpu_custom_call.1} parent=59 // pred_region
          %s579 = sand.u32 %s212, 1
          %s580 = scalar_lea.sflag [#allocation3], %s579
          %s581 = sand.u32 %s212, 1
          %s582 = smul.addr %s581, 8
          %s583 = scalar_lea.vmem [#allocation2], %s582
          %585 = dma.done %s580, 128
        $region64: #{tpu_custom_call.1} parent=59 // pred_fallthru
          _
        // Predicated region
        $region65: #{tpu_custom_call.1} parent=59 // pred_check
          %p586 = pneg %p253
        $region66: #{tpu_custom_call.1} parent=59 // pred_check_branch
          %588 = sbr.rel (%p586) target = $region68
        $region67: #{tpu_custom_call.1} parent=59 // pred_region
          %s589 = sand.u32 %s238, 1
          %s590 = scalar_lea.sflag [#allocation5], %s589
          %s591 = sand.u32 %s238, 1
          %s592 = smul.addr %s591, 8
          %s593 = scalar_lea.vmem [#allocation4], %s592
          %595 = dma.done %s590, 128
        $region68: #{tpu_custom_call.1} parent=59 // pred_fallthru
          _
      $region60: #{tpu_custom_call.1} parent=5 // pred_fallthru
        _
    $region6: #{tpu_custom_call.1} parent=1 // loop_footer
      %s25 = sadd.s32 1, %s21
    $region7: #{tpu_custom_call.1} parent=1 // loop_footer_branch
      %20 = sbr.rel target = $region3
    $region8: #{tpu_custom_call.1} parent=1 // loop_exit
      _
    %596 = vsyncpa [#allocation3], 1
    %s597 = scalar_lea.sflag [#allocation3], 1
    %598 = vsyncpa %s597, 1
    %599 = vsyncpa [#allocation5], 1
    %s600 = scalar_lea.sflag [#allocation5], 1
    %601 = vsyncpa %s600, 1

</llo_original>
